<compile_context>
chip_gen: v5e
topology: v5e:2x2
jax: 0.10.0
libtpu: 0.0.40
codegen_flags: <defaults>
</compile_context>

<pallas_src>
import jax
import jax.numpy as jnp
from jax.experimental import pallas as pl
from jax.experimental.pallas import tpu as pltpu

_LANE = 128  # vreg / MXU lane width


def _round_up(x, m):
    return (x + m - 1) // m * m


def _cdiv(a, b):
    return (a + b - 1) // b


def _sublane_mult(dtype):
    # Rows per native sublane tile: f32 -> 8, bf16 -> 16, int8/fp8 -> 32.
    return max(8, (8 * 4) // jnp.dtype(dtype).itemsize)


def _vmem_budget_bytes():
    """Generation-aware scoped-VMEM budget (leave headroom for compiler scratch)."""
    cap = 64 * 1024 * 1024  # conservative default = v7x per-core VMEM
    try:
        info = pltpu.get_tpu_info()
        cap_attr = getattr(info, "vmem_capacity_bytes", None)
        if cap_attr:
            cap = int(cap_attr)
    except Exception:
        pass
    # ~84% of physical: ~107 MiB on v5e/v6e (128 MiB), ~54 MiB on v7x (64 MiB).
    return min(max(int(cap * 0.84), 32 * 1024 * 1024), 112 * 1024 * 1024)


# --------------------------------------------------------------------------
# Kernels
# --------------------------------------------------------------------------
def _resident_kernel(x_ref, w1_ref, b1_ref, w2_ref, b2_ref, o_ref):
    """Both weight matrices VMEM-resident; one batch tile per grid step."""
    # linear1 + ReLU: MXU matmul in the weight dtype, f32 accumulate, VPU bias/relu.
    xv = x_ref[...].astype(w1_ref.dtype)
    h = jnp.dot(xv, w1_ref[...], preferred_element_type=jnp.float32)
    h = jnp.maximum(h + b1_ref[...], 0.0)
    # linear2.
    y = jnp.dot(h.astype(w2_ref.dtype), w2_ref[...],
                preferred_element_type=jnp.float32)
    o_ref[...] = (y + b2_ref[...]).astype(o_ref.dtype)


def _hidden_tiled_kernel(x_ref, w1_ref, b1_ref, w2_ref, b2_ref, o_ref, acc_ref):
    """Fallback: grid = (batch tiles, hidden tiles); accumulate y over hidden tiles."""
    j = pl.program_id(1)

    @pl.when(j == 0)
    def _():
        acc_ref[...] = jnp.zeros_like(acc_ref)

    xv = x_ref[...].astype(w1_ref.dtype)
    h = jnp.dot(xv, w1_ref[...], preferred_element_type=jnp.float32)
    h = jnp.maximum(h + b1_ref[...], 0.0)
    acc_ref[...] += jnp.dot(h.astype(w2_ref.dtype), w2_ref[...],
                            preferred_element_type=jnp.float32)

    @pl.when(j == pl.num_programs(1) - 1)
    def _():
        o_ref[...] = (acc_ref[...] + b2_ref[...]).astype(o_ref.dtype)


# --------------------------------------------------------------------------
# Wrappers
# --------------------------------------------------------------------------
def prepare_params(w1_t, b1, w2_t, b2, *, compute_dtype=jnp.bfloat16):
    """Pad lane dims to multiples of 128 and cast ONCE (do this outside the hot loop).

    w1_t: [ins, hids]  (transpose of torch linear1.weight)
    b1:   [hids] or [1, hids]
    w2_t: [hids, outs] (transpose of torch linear2.weight)
    b2:   [outs] or [1, outs]
    Zero padding is exact: padded hidden columns carry zero weight+bias
    (relu(0)=0) and meet zero w2 rows; padded output columns are sliced off.
    """
    ins, hids = w1_t.shape
    outs = w2_t.shape[1]
    hids_p = _round_up(hids, _LANE)
    outs_p = _round_up(outs, _LANE)
    w1p = jnp.zeros((ins, hids_p), compute_dtype).at[:, :hids].set(
        w1_t.astype(compute_dtype))
    b1p = jnp.zeros((1, hids_p), jnp.float32).at[:, :hids].set(
        jnp.reshape(b1, (1, hids)).astype(jnp.float32))
    w2p = jnp.zeros((hids_p, outs_p), compute_dtype).at[:hids, :outs].set(
        w2_t.astype(compute_dtype))
    b2p = jnp.zeros((1, outs_p), jnp.float32).at[:, :outs].set(
        jnp.reshape(b2, (1, outs)).astype(jnp.float32))
    return {"w1": w1p, "b1": b1p, "w2": w2p, "b2": b2p,
            "ins": ins, "hids": hids, "outs": outs}


def _spec(shape, index_map, pipeline_mode=None):
    if pipeline_mode is None:
        return pl.BlockSpec(shape, index_map)
    return pl.BlockSpec(shape, index_map, pipeline_mode=pipeline_mode)


def _single_buffered():
    try:
        return pl.Buffered(1)
    except Exception:
        return None


def _run_with_fallback(run):
    """Try single-buffered resident operands; fall back to default buffering."""
    mode = _single_buffered()
    if mode is None:
        return run(None)
    try:
        out = run(mode)
        jax.block_until_ready(out)  # surface any async lowering/runtime failure
        return out
    except Exception:
        return run(None)


def _pad_batch(x, bs_p):
    bs = x.shape[0]
    if bs_p == bs:
        return x
    return jnp.zeros((bs_p,) + x.shape[1:], x.dtype).at[:bs].set(x)


def _derive_tm(bs, mult, tm_cap, min_batch_tiles):
    """Even-out batch tiles (minimal padding) and prefer >=min_batch_tiles tiles."""
    tm_cap = max(mult, (int(tm_cap) // mult) * mult)
    n_tiles = _cdiv(bs, tm_cap)
    if n_tiles < min_batch_tiles and bs >= min_batch_tiles * mult:
        n_tiles = min_batch_tiles          # lets v7x shard across its 2 TCs
    tm = _round_up(_cdiv(bs, n_tiles), mult)
    tm = min(tm, _round_up(bs, mult))
    n_tiles = _cdiv(bs, tm)
    return tm, n_tiles * tm, n_tiles


def _pick_hidden_tile(hids_p, target):
    """Largest multiple of 128 that divides hids_p and is <= target."""
    target = max(_LANE, min(int(target), hids_p))
    k = hids_p // _LANE
    best = _LANE
    for d in range(1, k + 1):
        if k % d == 0 and d * _LANE <= target:
            best = d * _LANE
    return best


def apply_two_layer_net(x, params, *, tm_max=1024, min_batch_tiles=2,
                        hidden_tile=None):
    """relu(x @ w1 + b1) @ w2 + b2 using params from prepare_params()."""
    bs, ins = x.shape
    assert ins == params["ins"], (ins, params["ins"])
    w1p, b1p, w2p, b2p = params["w1"], params["b1"], params["w2"], params["b2"]
    hids_p, outs_p = w1p.shape[1], w2p.shape[1]
    outs = params["outs"]
    out_dtype = x.dtype
    mm_dtype = w1p.dtype

    x_item = jnp.dtype(x.dtype).itemsize
    out_item = jnp.dtype(out_dtype).itemsize
    mm_item = jnp.dtype(mm_dtype).itemsize
    mult = max(_sublane_mult(x.dtype), _sublane_mult(out_dtype))
    ins_vp = _round_up(ins, _LANE)   # lane footprint of one x row in VMEM

    budget = _vmem_budget_bytes()
    slack = 2 * 1024 * 1024          # headroom for compiler-internal scratch

    # Resident-weight footprint (single-buffered) and per-batch-row tile bytes.
    resident = (w1p.size + w2p.size) * mm_item + (b1p.size + b2p.size) * 4
    per_row = (2 * ins_vp * x_item        # x tile (double-buffered)
               + 2 * outs_p * out_item    # out tile (double-buffered)
               + hids_p * 4               # f32 h intermediate
               + (hids_p * mm_item if mm_dtype != jnp.float32 else 0)
               + (ins_vp * mm_item if mm_dtype != x.dtype else 0))

    use_hidden = hidden_tile is not None
    tile_budget = budget - slack - resident
    if not use_hidden and tile_budget < mult * per_row:
        use_hidden = True                 # weights can't stay resident -> K/N tiling

    flops = 2 * bs * ins * hids_p + 2 * bs * hids_p * outs_p
    bytes_accessed = (bs * ins * x_item + (w1p.size + w2p.size) * mm_item
                      + (b1p.size + b2p.size) * 4 + bs * outs_p * out_item)
    cost = pl.CostEstimate(flops=int(flops), transcendentals=0,
                           bytes_accessed=int(bytes_accessed))

    if not use_hidden:
        tm_cap = min(tm_max, tile_budget // per_row)
        tm, bs_p, n_tiles = _derive_tm(bs, mult, tm_cap, min_batch_tiles)
        xp = _pad_batch(x, bs_p)

        def run(resident_mode):
            return pl.pallas_call(
                _resident_kernel,
                out_shape=jax.ShapeDtypeStruct((bs_p, outs_p), out_dtype),
                grid=(n_tiles,),
                in_specs=[
                    # batch-tiled x (full last dim satisfies the (8,128) rule).
                    pl.BlockSpec((tm, ins), lambda i: (i, 0)),
                    # resident weights/biases: constant index_map, single-buffered.
                    _spec((ins, hids_p), lambda i: (0, 0), resident_mode),
                    _spec((1, hids_p), lambda i: (0, 0), resident_mode),
                    _spec((hids_p, outs_p), lambda i: (0, 0), resident_mode),
                    _spec((1, outs_p), lambda i: (0, 0), resident_mode),
                ],
                out_specs=pl.BlockSpec((tm, outs_p), lambda i: (i, 0)),
                compiler_params=pltpu.CompilerParams(
                    dimension_semantics=("parallel",),
                    vmem_limit_bytes=int(budget)),
                cost_estimate=cost,
            )(xp, w1p, b1p, w2p, b2p)

        out_p = _run_with_fallback(run)
        return out_p[:bs, :outs]

    # ---- Hidden-tiled fallback: grid = (batch tiles, hidden tiles) ----
    th = _pick_hidden_tile(hids_p, hidden_tile if hidden_tile else 1024)
    per_row_h = (2 * ins_vp * x_item + 2 * outs_p * out_item
                 + outs_p * 4              # f32 accumulator scratch
                 + th * 4
                 + (th * mm_item if mm_dtype != jnp.float32 else 0)
                 + (ins_vp * mm_item if mm_dtype != x.dtype else 0))
    fixed_h = 2 * (ins_vp * th + th * outs_p) * mm_item + 2 * (th + outs_p) * 4
    tm_cap = min(tm_max, max(mult, (budget - slack - fixed_h) // per_row_h))
    tm, bs_p, n_tiles = _derive_tm(bs, mult, tm_cap, min_batch_tiles)
    xp = _pad_batch(x, bs_p)

    out_p = pl.pallas_call(
        _hidden_tiled_kernel,
        out_shape=jax.ShapeDtypeStruct((bs_p, outs_p), out_dtype),
        grid=(n_tiles, hids_p // th),
        in_specs=[
            pl.BlockSpec((tm, ins), lambda i, j: (i, 0)),      # resident across j
            pl.BlockSpec((ins, th), lambda i, j: (0, j)),
            pl.BlockSpec((1, th), lambda i, j: (0, j)),
            pl.BlockSpec((th, outs_p), lambda i, j: (j, 0)),
            pl.BlockSpec((1, outs_p), lambda i, j: (0, 0)),
        ],
        out_specs=pl.BlockSpec((tm, outs_p), lambda i, j: (i, 0)),
        scratch_shapes=[pltpu.VMEM((tm, outs_p), jnp.float32)],
        compiler_params=pltpu.CompilerParams(
            dimension_semantics=("parallel", "arbitrary"),
            vmem_limit_bytes=int(budget)),
        cost_estimate=cost,
    )(xp, w1p, b1p, w2p, b2p)
    return out_p[:bs, :outs]
    # TODO(synk): add ins (first-matmul K) tiling for very large input widths;
    # current fallback only tiles the hidden dimension.


def two_layer_net(x, w1_t, b1, w2_t, b2, *, compute_dtype="auto",
                  tm_max=1024, min_batch_tiles=2, hidden_tile=None):
    """One-shot convenience wrapper (pads weights per call).

    For repeated calls, call prepare_params(...) once and reuse it with
    apply_two_layer_net(). compute_dtype="auto" -> bf16 MXU operands (f32
    accumulation) when x is f32; pass jnp.float32 for exact-f32 numerics.
    """
    if compute_dtype in (None, "auto"):
        mm_dtype = jnp.bfloat16 if x.dtype == jnp.float32 else x.dtype
    else:
        mm_dtype = compute_dtype
    params = prepare_params(w1_t, b1, w2_t, b2, compute_dtype=mm_dtype)
    return apply_two_layer_net(x, params, tm_max=tm_max,
                               min_batch_tiles=min_batch_tiles,
                               hidden_tile=hidden_tile)


def init_params(key, ins, hids, outs, dtype=jnp.float32):
    """Deterministic init mimicking torch.nn.Linear (U(-1/sqrt(fan_in), +))."""
    k1, k2, k3, k4 = jax.random.split(key, 4)
    bound1 = 1.0 / jnp.sqrt(ins)
    bound2 = 1.0 / jnp.sqrt(hids)
    w1_t = jax.random.uniform(k1, (ins, hids), dtype, -bound1, bound1)
    b1 = jax.random.uniform(k2, (1, hids), dtype, -bound1, bound1)
    w2_t = jax.random.uniform(k3, (hids, outs), dtype, -bound2, bound2)
    b2 = jax.random.uniform(k4, (1, outs), dtype, -bound2, bound2)
    return w1_t, b1, w2_t, b2


def _ref(x, w1_t, b1, w2_t, b2):
    h = jnp.maximum(x @ w1_t + b1.reshape(1, -1), 0.0)
    return h @ w2_t + b2.reshape(1, -1)


if __name__ == "__main__":
    bs, ins, hids, outs = 8, 32, 64, 16
    key = jax.random.PRNGKey(0)
    kx, kp, kp2, kx2 = jax.random.split(key, 4)
    x = jax.random.normal(kx, (bs, ins), jnp.float32)
    w1_t, b1, w2_t, b2 = init_params(kp, ins, hids, outs)
    y_ref = _ref(x, w1_t, b1, w2_t, b2)

    # 1) Exact-f32 path, weights prepared once (resident-weight kernel).
    params_f32 = prepare_params(w1_t, b1, w2_t, b2, compute_dtype=jnp.float32)
    y = jax.block_until_ready(apply_two_layer_net(x, params_f32))
    assert y.shape == (bs, outs)
    assert jnp.allclose(y, y_ref, atol=1e-5, rtol=1e-5)

    # 2) Default bf16-MXU path (f32 accumulation) -> loosened tolerance.
    y_bf = jax.block_until_ready(two_layer_net(x, w1_t, b1, w2_t, b2))
    assert y_bf.shape == (bs, outs)
    assert jnp.allclose(y_bf, y_ref, atol=7.5e-2, rtol=7.5e-2)

    # 3) Ragged batch -> multiple evened-out batch tiles (multi-step grid).
    bs2 = 141
    x2 = jax.random.normal(kx2, (bs2, ins), jnp.float32)
    y2 = jax.block_until_ready(apply_two_layer_net(x2, params_f32))
    y2_ref = _ref(x2, w1_t, b1, w2_t, b2)
    assert y2.shape == (bs2, outs)
    assert jnp.allclose(y2, y2_ref, atol=1e-5, rtol=1e-5)

    # 4) Hidden-tiled fallback kernel, forced: hids_p=256 with 128-wide tiles
    #    exercises the accumulator / pl.when init+finalize across 2 grid steps.
    hids_big = 256
    w1b_t, b1b, w2b_t, b2b = init_params(kp2, ins, hids_big, outs)
    params_big = prepare_params(w1b_t, b1b, w2b_t, b2b, compute_dtype=jnp.float32)
    y3 = jax.block_until_ready(apply_two_layer_net(x, params_big, hidden_tile=128))
    y3_ref = _ref(x, w1b_t, b1b, w2b_t, b2b)
    assert y3.shape == (bs, outs)
    assert jnp.allclose(y3, y3_ref, atol=1e-4, rtol=1e-4)

    print("KERNEL_OK")
</pallas_src>

<mosaic_0001>
module attributes {stable_mosaic.version = 11 : i64} {
  func.func @_resident_kernel(%arg0: i32, %arg1: memref<8x32xf32, #tpu.memory_space<vmem>>, %arg2: memref<32x128xf32, #tpu.memory_space<vmem>>, %arg3: memref<1x128xf32, #tpu.memory_space<vmem>>, %arg4: memref<128x128xf32, #tpu.memory_space<vmem>>, %arg5: memref<1x128xf32, #tpu.memory_space<vmem>>, %arg6: memref<8x128xf32, #tpu.memory_space<vmem>>) attributes {dimension_semantics = [#tpu.dimension_semantics<parallel>], iteration_bounds = array<i64: 1>, scalar_prefetch = 0 : i64, scratch_operands = 0 : i64, tpu.core_type = #tpu.core_type<tc>, window_params = [{transform_indices = @transform_0, window_bounds = array<i64: 8, 32>}, {pipeline_mode = #tpu.pipeline_mode<synchronous>, transform_indices = @transform_1, window_bounds = array<i64: 32, 128>}, {pipeline_mode = #tpu.pipeline_mode<synchronous>, transform_indices = @transform_2, window_bounds = array<i64: 1, 128>}, {pipeline_mode = #tpu.pipeline_mode<synchronous>, transform_indices = @transform_3, window_bounds = array<i64: 128, 128>}, {pipeline_mode = #tpu.pipeline_mode<synchronous>, transform_indices = @transform_4, window_bounds = array<i64: 1, 128>}, {transform_indices = @transform_5, window_bounds = array<i64: 8, 128>}]} {
    %c0 = arith.constant 0 : index
    %c0_0 = arith.constant 0 : index
    %0 = vector.load %arg1[%c0, %c0_0] : memref<8x32xf32, #tpu.memory_space<vmem>>, vector<8x32xf32>
    %c0_1 = arith.constant 0 : index
    %c0_2 = arith.constant 0 : index
    %1 = vector.load %arg2[%c0_1, %c0_2] : memref<32x128xf32, #tpu.memory_space<vmem>>, vector<32x128xf32>
    %cst = arith.constant dense<0.000000e+00> : vector<8x128xf32>
    %2 = tpu.matmul %0, %1, %cst {dimension_numbers = #tpu.dot_dimension_numbers<[1], [0], [0], [1], [0, 0, 1, 1], [], []>} : vector<8x32xf32>, vector<32x128xf32>, vector<8x128xf32> -> vector<8x128xf32>
    %c0_3 = arith.constant 0 : index
    %c0_4 = arith.constant 0 : index
    %3 = vector.load %arg3[%c0_3, %c0_4] : memref<1x128xf32, #tpu.memory_space<vmem>>, vector<1x128xf32>
    %4 = vector.broadcast %3 : vector<1x128xf32> to vector<8x128xf32>
    %5 = arith.addf %2, %4 : vector<8x128xf32>
    %cst_5 = arith.constant 0.000000e+00 : f32
    %6 = vector.broadcast %cst_5 : f32 to vector<8x128xf32>
    %7 = arith.maximumf %5, %6 : vector<8x128xf32>
    %c0_6 = arith.constant 0 : index
    %c0_7 = arith.constant 0 : index
    %8 = vector.load %arg4[%c0_6, %c0_7] : memref<128x128xf32, #tpu.memory_space<vmem>>, vector<128x128xf32>
    %cst_8 = arith.constant dense<0.000000e+00> : vector<8x128xf32>
    %9 = tpu.matmul %7, %8, %cst_8 {dimension_numbers = #tpu.dot_dimension_numbers<[1], [0], [0], [1], [0, 0, 1, 1], [], []>} : vector<8x128xf32>, vector<128x128xf32>, vector<8x128xf32> -> vector<8x128xf32>
    %c0_9 = arith.constant 0 : index
    %c0_10 = arith.constant 0 : index
    %10 = vector.load %arg5[%c0_9, %c0_10] : memref<1x128xf32, #tpu.memory_space<vmem>>, vector<1x128xf32>
    %11 = vector.broadcast %10 : vector<1x128xf32> to vector<8x128xf32>
    %12 = arith.addf %9, %11 : vector<8x128xf32>
    %c0_11 = arith.constant 0 : index
    %c0_12 = arith.constant 0 : index
    %13 = vector.load %arg6[%c0_11, %c0_12] : memref<8x128xf32, #tpu.memory_space<vmem>>, vector<8x128xf32>
    tpu.vector_store %arg6[%c0_11, %c0_12], %12 {strides = array<i32>} : memref<8x128xf32, #tpu.memory_space<vmem>>, vector<8x128xf32>,
    return
  }
  func.func @transform_0(%arg0: i32) -> (i32, i32) {
    %c0_i32 = arith.constant 0 : i32
    %c0_i32_0 = arith.constant 0 : i32
    return %arg0, %c0_i32 : i32, i32
  }
  func.func @transform_1(%arg0: i32) -> (i32, i32) {
    %c0_i32 = arith.constant 0 : i32
    %c0_i32_0 = arith.constant 0 : i32
    %c0_i32_1 = arith.constant 0 : i32
    return %c0_i32, %c0_i32_0 : i32, i32
  }
  func.func @transform_2(%arg0: i32) -> (i32, i32) {
    %c0_i32 = arith.constant 0 : i32
    %c0_i32_0 = arith.constant 0 : i32
    %c0_i32_1 = arith.constant 0 : i32
    return %c0_i32, %c0_i32_0 : i32, i32
  }
  func.func @transform_3(%arg0: i32) -> (i32, i32) {
    %c0_i32 = arith.constant 0 : i32
    %c0_i32_0 = arith.constant 0 : i32
    %c0_i32_1 = arith.constant 0 : i32
    return %c0_i32, %c0_i32_0 : i32, i32
  }
  func.func @transform_4(%arg0: i32) -> (i32, i32) {
    %c0_i32 = arith.constant 0 : i32
    %c0_i32_0 = arith.constant 0 : i32
    %c0_i32_1 = arith.constant 0 : i32
    return %c0_i32, %c0_i32_0 : i32, i32
  }
  func.func @transform_5(%arg0: i32) -> (i32, i32) {
    %c0_i32 = arith.constant 0 : i32
    %c0_i32_0 = arith.constant 0 : i32
    return %arg0, %c0_i32 : i32, i32
  }
}

module attributes {stable_mosaic.version = 11 : i64} {
  func.func @_resident_kernel(%arg0: i32, %arg1: memref<8x32xf32, #tpu.memory_space<vmem>>, %arg2: memref<32x128xf32, #tpu.memory_space<vmem>>, %arg3: memref<1x128xf32, #tpu.memory_space<vmem>>, %arg4: memref<128x128xf32, #tpu.memory_space<vmem>>, %arg5: memref<1x128xf32, #tpu.memory_space<vmem>>, %arg6: memref<8x128xf32, #tpu.memory_space<vmem>>) attributes {dimension_semantics = [#tpu.dimension_semantics<parallel>], iteration_bounds = array<i64: 1>, scalar_prefetch = 0 : i64, scratch_operands = 0 : i64, tpu.core_type = #tpu.core_type<tc>, window_params = [{transform_indices = @transform_0, window_bounds = array<i64: 8, 32>}, {pipeline_mode = #tpu.pipeline_mode<synchronous>, transform_indices = @transform_1, window_bounds = array<i64: 32, 128>}, {pipeline_mode = #tpu.pipeline_mode<synchronous>, transform_indices = @transform_2, window_bounds = array<i64: 1, 128>}, {pipeline_mode = #tpu.pipeline_mode<synchronous>, transform_indices = @transform_3, window_bounds = array<i64: 128, 128>}, {pipeline_mode = #tpu.pipeline_mode<synchronous>, transform_indices = @transform_4, window_bounds = array<i64: 1, 128>}, {transform_indices = @transform_5, window_bounds = array<i64: 8, 128>}]} {
    %c0 = arith.constant 0 : index
    %c0_0 = arith.constant 0 : index
    %0 = vector.load %arg1[%c0, %c0_0] : memref<8x32xf32, #tpu.memory_space<vmem>>, vector<8x32xf32>
    %c0_1 = arith.constant 0 : index
    %c0_2 = arith.constant 0 : index
    %1 = vector.load %arg2[%c0_1, %c0_2] : memref<32x128xf32, #tpu.memory_space<vmem>>, vector<32x128xf32>
    %cst = arith.constant dense<0.000000e+00> : vector<8x128xf32>
    %2 = tpu.matmul %0, %1, %cst {dimension_numbers = #tpu.dot_dimension_numbers<[1], [0], [0], [1], [0, 0, 1, 1], [], []>} : vector<8x32xf32>, vector<32x128xf32>, vector<8x128xf32> -> vector<8x128xf32>
    %c0_3 = arith.constant 0 : index
    %c0_4 = arith.constant 0 : index
    %3 = vector.load %arg3[%c0_3, %c0_4] : memref<1x128xf32, #tpu.memory_space<vmem>>, vector<1x128xf32>
    %4 = vector.broadcast %3 : vector<1x128xf32> to vector<8x128xf32>
    %5 = arith.addf %2, %4 : vector<8x128xf32>
    %cst_5 = arith.constant 0.000000e+00 : f32
    %6 = vector.broadcast %cst_5 : f32 to vector<8x128xf32>
    %7 = arith.maximumf %5, %6 : vector<8x128xf32>
    %c0_6 = arith.constant 0 : index
    %c0_7 = arith.constant 0 : index
    %8 = vector.load %arg4[%c0_6, %c0_7] : memref<128x128xf32, #tpu.memory_space<vmem>>, vector<128x128xf32>
    %cst_8 = arith.constant dense<0.000000e+00> : vector<8x128xf32>
    %9 = tpu.matmul %7, %8, %cst_8 {dimension_numbers = #tpu.dot_dimension_numbers<[1], [0], [0], [1], [0, 0, 1, 1], [], []>} : vector<8x128xf32>, vector<128x128xf32>, vector<8x128xf32> -> vector<8x128xf32>
    %c0_9 = arith.constant 0 : index
    %c0_10 = arith.constant 0 : index
    %10 = vector.load %arg5[%c0_9, %c0_10] : memref<1x128xf32, #tpu.memory_space<vmem>>, vector<1x128xf32>
    %11 = vector.broadcast %10 : vector<1x128xf32> to vector<8x128xf32>
    %12 = arith.addf %9, %11 : vector<8x128xf32>
    %c0_11 = arith.constant 0 : index
    %c0_12 = arith.constant 0 : index
    %13 = vector.load %arg6[%c0_11, %c0_12] : memref<8x128xf32, #tpu.memory_space<vmem>>, vector<8x128xf32>
    tpu.vector_store %arg6[%c0_11, %c0_12], %12 {strides = array<i32>} : memref<8x128xf32, #tpu.memory_space<vmem>>, vector<8x128xf32>,
    return
  }
  func.func @transform_0(%arg0: i32) -> (i32, i32) {
    %c0_i32 = arith.constant 0 : i32
    %c0_i32_0 = arith.constant 0 : i32
    return %arg0, %c0_i32 : i32, i32
  }
  func.func @transform_1(%arg0: i32) -> (i32, i32) {
    %c0_i32 = arith.constant 0 : i32
    %c0_i32_0 = arith.constant 0 : i32
    %c0_i32_1 = arith.constant 0 : i32
    return %c0_i32, %c0_i32_0 : i32, i32
  }
  func.func @transform_2(%arg0: i32) -> (i32, i32) {
    %c0_i32 = arith.constant 0 : i32
    %c0_i32_0 = arith.constant 0 : i32
    %c0_i32_1 = arith.constant 0 : i32
    return %c0_i32, %c0_i32_0 : i32, i32
  }
  func.func @transform_3(%arg0: i32) -> (i32, i32) {
    %c0_i32 = arith.constant 0 : i32
    %c0_i32_0 = arith.constant 0 : i32
    %c0_i32_1 = arith.constant 0 : i32
    return %c0_i32, %c0_i32_0 : i32, i32
  }
  func.func @transform_4(%arg0: i32) -> (i32, i32) {
    %c0_i32 = arith.constant 0 : i32
    %c0_i32_0 = arith.constant 0 : i32
    %c0_i32_1 = arith.constant 0 : i32
    return %c0_i32, %c0_i32_0 : i32, i32
  }
  func.func @transform_5(%arg0: i32) -> (i32, i32) {
    %c0_i32 = arith.constant 0 : i32
    %c0_i32_0 = arith.constant 0 : i32
    return %arg0, %c0_i32 : i32, i32
  }
}

</mosaic_0001>

<llo_original>
// kernel: tpu_custom_call.1
$region0: #{tpu_custom_call.1}
  #allocation0 [shape = 'u32[]', space=smem, size = 0x4, offset = 0x4, fixed_abs, tag = 'smem constant byte address 0x4 - core index']
  #allocation1 [shape = 'u32[72,128]{1,0:T(1,128)}', space=vmem, size = 0x9000, scoped, tag = 'internal scratch']
  %s0 = inlined_call_operand.hbm [shape: f32[8,32], index: 0, kind: input, shape index: {}]
  %s1 = inlined_call_operand.hbm [shape: f32[32,128], index: 1, kind: input, shape index: {}]
  %s2 = inlined_call_operand.vmem [shape: f32[1,128], index: 2, kind: input, shape index: {}]
  %s3 = inlined_call_operand.hbm [shape: f32[128,128], index: 3, kind: input, shape index: {}]
  %s4 = inlined_call_operand.vmem [shape: f32[1,128], index: 4, kind: input, shape index: {}]
  %s5 = inlined_call_operand.hbm [shape: f32[8,128], index: 5, kind: output, shape index: {}]
  %s6 = sld [smem:[#allocation0]]
  $region42: #{tpu_custom_call.1} parent=0
    _
  %s8 = ssub.s32 1, %s6
  %s9 = scalar_select 0, %s8, %s6
  $region1: #{tpu_custom_call.1} parent=0
    #allocation2 [shape = 'u8[4096]{0}', space=vmem, size = 0x1000, scoped, tag = 'input window, operand 0, single buffered']
    #allocation3 [shape = 's32[1]{0}', space=sflag, size = 0x4, scoped, tag = 'scoped memory for tpu_custom_call.1']
    #allocation4 [shape = 's32[1]{0}', space=sflag, size = 0x4, scoped, tag = 'scoped memory for tpu_custom_call.1']
    #allocation5 [shape = 'u8[16384]{0}', space=vmem, size = 0x4000, scoped, tag = 'input window, operand 1, single buffered']
    #allocation6 [shape = 's32[1]{0}', space=sflag, size = 0x4, scoped, tag = 'scoped memory for tpu_custom_call.1']
    #allocation7 [shape = 'u8[65536]{0}', space=vmem, size = 0x10000, scoped, tag = 'input window, operand 3, single buffered']
    #allocation8 [shape = 'u8[4096]{0}', space=vmem, size = 0x1000, scoped, tag = 'output window, operand 0, single buffered']
    %10 = vsyncpa [#allocation3], 0
    %11 = vsyncpa [#allocation6], 0
    %12 = vsyncpa [#allocation4], 0
    // Predicated region
    $region2: #{tpu_custom_call.1} parent=1 // pred_check
      _
    $region3: #{tpu_custom_call.1} parent=1 // pred_check_branch
      %14 = sbr.rel (0) target = $region5
    $region4: #{tpu_custom_call.1} parent=1 // pred_region
      %16 = vsyncadd [#allocation3], 0
      %s18 = sshll.u32 %s0, 4
      %s19 = int_to_ptr.hbm [resolvable:$true] %s18
      %s20 = sshll.u32 [#allocation2], 4
      %s21 = int_to_ptr.vmem [resolvable:$true] %s20
      %23 = dma.hbm_to_vmem [thread:$0]  %s19, 128, %s21, [#allocation3]
    $region5: #{tpu_custom_call.1} parent=1 // pred_fallthru
      _
    // Predicated region
    $region6: #{tpu_custom_call.1} parent=1 // pred_check
      _
    $region7: #{tpu_custom_call.1} parent=1 // pred_check_branch
      %25 = sbr.rel (0) target = $region9
    $region8: #{tpu_custom_call.1} parent=1 // pred_region
      %27 = vsyncadd [#allocation6], 0
      %s28 = sshll.u32 %s1, 4
      %s29 = int_to_ptr.hbm [resolvable:$true] %s28
      %s30 = sshll.u32 [#allocation5], 4
      %s31 = int_to_ptr.vmem [resolvable:$true] %s30
      %36 = dma.hbm_to_vmem [thread:$0]  %s29, 512, %s31, [#allocation6], 128, 128, 8
    $region9: #{tpu_custom_call.1} parent=1 // pred_fallthru
      _
    // Predicated region
    $region10: #{tpu_custom_call.1} parent=1 // pred_check
      _
    $region11: #{tpu_custom_call.1} parent=1 // pred_check_branch
      %38 = sbr.rel (0) target = $region13
    $region12: #{tpu_custom_call.1} parent=1 // pred_region
      _
    $region13: #{tpu_custom_call.1} parent=1 // pred_fallthru
      _
    // Predicated region
    $region14: #{tpu_custom_call.1} parent=1 // pred_check
      _
    $region15: #{tpu_custom_call.1} parent=1 // pred_check_branch
      %40 = sbr.rel (0) target = $region17
    $region16: #{tpu_custom_call.1} parent=1 // pred_region
      %42 = vsyncadd [#allocation6], 0
      %s43 = sshll.u32 %s3, 4
      %s44 = int_to_ptr.hbm [resolvable:$true] %s43
      %s45 = sshll.u32 [#allocation7], 4
      %s46 = int_to_ptr.vmem [resolvable:$true] %s45
      %51 = dma.hbm_to_vmem [thread:$0]  %s44, 2048, %s46, [#allocation6], 128, 128, 8
    $region17: #{tpu_custom_call.1} parent=1 // pred_fallthru
      _
    // Predicated region
    $region18: #{tpu_custom_call.1} parent=1 // pred_check
      _
    $region19: #{tpu_custom_call.1} parent=1 // pred_check_branch
      %53 = sbr.rel (0) target = $region21
    $region20: #{tpu_custom_call.1} parent=1 // pred_region
      _
    $region21: #{tpu_custom_call.1} parent=1 // pred_fallthru
      _
    // Predicated region
    $region22: #{tpu_custom_call.1} parent=1 // pred_check
      _
    $region23: #{tpu_custom_call.1} parent=1 // pred_check_branch
      %55 = sbr.rel (0) target = $region25
    $region24: #{tpu_custom_call.1} parent=1 // pred_region
      %57 = dma.done [#allocation3], 128
    $region25: #{tpu_custom_call.1} parent=1 // pred_fallthru
      _
    // Predicated region
    $region26: #{tpu_custom_call.1} parent=1 // pred_check
      _
    $region27: #{tpu_custom_call.1} parent=1 // pred_check_branch
      %59 = sbr.rel (0) target = $region29
    $region28: #{tpu_custom_call.1} parent=1 // pred_region
      %61 = dma.done [#allocation6], 512
    $region29: #{tpu_custom_call.1} parent=1 // pred_fallthru
      _
    // Predicated region
    $region30: #{tpu_custom_call.1} parent=1 // pred_check
      _
    $region31: #{tpu_custom_call.1} parent=1 // pred_check_branch
      %63 = sbr.rel (0) target = $region33
    $region32: #{tpu_custom_call.1} parent=1 // pred_region
      %65 = dma.done [#allocation6], 2048
    $region33: #{tpu_custom_call.1} parent=1 // pred_fallthru
      _
    %v66 = vld [vmem:[#allocation2] sm:$0xff]
    %v67 = vld [vmem:[#allocation5] sm:$0xff]
    %v68 = vld [vmem:[#allocation5 + $0x8] sm:$0xff]
    %v69 = vld [vmem:[#allocation5 + $0x10] sm:$0xff]
    %v70 = vld [vmem:[#allocation5 + $0x18] sm:$0xff]
    %v71 = vld [vmem:[%s2] sm:$0x1]
    %v73 = vperm.slane %v71, 0
    %vm75 = vcmask 261120
    %v77 = vsel %vm75, %v66, 0
    %79 = vmatpush.msra.mxu0 0.0
    %80 = vmatpush.msra.mxu0 0.0
    %81 = vmatpush.msra.mxu0 0.0
    %82 = vmatpush.msra.mxu0 0.0
    %83 = vmatpush.msra.mxu0 0.0
    %84 = vmatpush.msra.mxu0 0.0
    %85 = vmatpush.msra.mxu0 0.0
    %86 = vmatpush.msra.mxu0 0.0
    %87 = vmatpush.msra.mxu0 0.0
    %88 = vmatpush.msra.mxu0 0.0
    %89 = vmatpush.msra.mxu0 0.0
    %90 = vmatpush.msra.mxu0 0.0
    %91 = vmatpush.msra.mxu0 %v70
    %92 = vmatpush.msra.mxu0 %v69
    %93 = vmatpush.msra.mxu0 %v68
    %94 = vmatpush.msra.mxu0 %v67
    %95 = vmatmul.f32.gmra.mxu0 %v77
    %v96 = vpop.f32.mrf.mxu0
    %v97 = vadd.f32 %v73, %v96
    %98 = vdwg.mxu0
    %v99 = vmax.f32 %v97, 0.0
    %v100 = vld [vmem:[#allocation7] sm:$0xff]
    %v101 = vld [vmem:[#allocation7 + $0x8] sm:$0xff]
    %v102 = vld [vmem:[#allocation7 + $0x10] sm:$0xff]
    %v103 = vld [vmem:[#allocation7 + $0x18] sm:$0xff]
    %v104 = vld [vmem:[#allocation7 + $0x20] sm:$0xff]
    %v105 = vld [vmem:[#allocation7 + $0x28] sm:$0xff]
    %v106 = vld [vmem:[#allocation7 + $0x30] sm:$0xff]
    %v107 = vld [vmem:[#allocation7 + $0x38] sm:$0xff]
    %v108 = vld [vmem:[#allocation7 + $0x40] sm:$0xff]
    %v109 = vld [vmem:[#allocation7 + $0x48] sm:$0xff]
    %v110 = vld [vmem:[#allocation7 + $0x50] sm:$0xff]
    %v111 = vld [vmem:[#allocation7 + $0x58] sm:$0xff]
    %v112 = vld [vmem:[#allocation7 + $0x60] sm:$0xff]
    %v113 = vld [vmem:[#allocation7 + $0x68] sm:$0xff]
    %v114 = vld [vmem:[#allocation7 + $0x70] sm:$0xff]
    %v115 = vld [vmem:[#allocation7 + $0x78] sm:$0xff]
    %v116 = vld [vmem:[%s4] sm:$0x1]
    %v118 = vperm.slane %v116, 0
    %120 = vmatpush.msra.mxu0 %v115
    %121 = vmatpush.msra.mxu0 %v114
    %122 = vmatpush.msra.mxu0 %v113
    %123 = vmatpush.msra.mxu0 %v112
    %124 = vmatpush.msra.mxu0 %v111
    %125 = vmatpush.msra.mxu0 %v110
    %126 = vmatpush.msra.mxu0 %v109
    %127 = vmatpush.msra.mxu0 %v108
    %128 = vmatpush.msra.mxu0 %v107
    %129 = vmatpush.msra.mxu0 %v106
    %130 = vmatpush.msra.mxu0 %v105
    %131 = vmatpush.msra.mxu0 %v104
    %132 = vmatpush.msra.mxu0 %v103
    %133 = vmatpush.msra.mxu0 %v102
    %134 = vmatpush.msra.mxu0 %v101
    %135 = vmatpush.msra.mxu0 %v100
    %136 = vmatmul.f32.gmra.mxu0 %v99
    %v137 = vpop.f32.mrf.mxu0
    %v138 = vadd.f32 %v118, %v137
    %139 = vdwg.mxu0
    %140 = vst [vmem:[#allocation8] sm:$0xff] %v138
    // Predicated region
    $region34: #{tpu_custom_call.1} parent=1 // pred_check
      _
    $region35: #{tpu_custom_call.1} parent=1 // pred_check_branch
      %142 = sbr.rel (0) target = $region37
    $region36: #{tpu_custom_call.1} parent=1 // pred_region
      %144 = vsyncadd [#allocation4], 0
      %s146 = sshll.u32 [#allocation8], 4
      %s147 = int_to_ptr.vmem [resolvable:$true] %s146
      %s148 = sshll.u32 %s5, 4
      %s149 = int_to_ptr.hbm [resolvable:$true] %s148
      %151 = dma.vmem_to_hbm [thread:$0]  %s147, 128, %s149, [#allocation4]
    $region37: #{tpu_custom_call.1} parent=1 // pred_fallthru
      _
    // Predicated region
    $region38: #{tpu_custom_call.1} parent=1 // pred_check
      _
    $region39: #{tpu_custom_call.1} parent=1 // pred_check_branch
      %153 = sbr.rel (0) target = $region41
    $region40: #{tpu_custom_call.1} parent=1 // pred_region
      %155 = dma.done [#allocation4], 128
    $region41: #{tpu_custom_call.1} parent=1 // pred_fallthru
      _
    %156 = vsyncpa [#allocation3], 1
    %157 = vsyncpa [#allocation6], 1
    %158 = vsyncpa [#allocation4], 1

// kernel: tpu_custom_call.1
$region0: #{tpu_custom_call.1}
  #allocation0 [shape = 'u32[]', space=smem, size = 0x4, offset = 0x4, fixed_abs, tag = 'smem constant byte address 0x4 - core index']
  #allocation1 [shape = 'u32[72,128]{1,0:T(1,128)}', space=vmem, size = 0x9000, scoped, tag = 'internal scratch']
  %s0 = inlined_call_operand.hbm [shape: f32[8,32], index: 0, kind: input, shape index: {}]
  %s1 = inlined_call_operand.hbm [shape: f32[32,128], index: 1, kind: input, shape index: {}]
  %s2 = inlined_call_operand.vmem [shape: f32[1,128], index: 2, kind: input, shape index: {}]
  %s3 = inlined_call_operand.hbm [shape: f32[128,128], index: 3, kind: input, shape index: {}]
  %s4 = inlined_call_operand.vmem [shape: f32[1,128], index: 4, kind: input, shape index: {}]
  %s5 = inlined_call_operand.hbm [shape: f32[8,128], index: 5, kind: output, shape index: {}]
  %s6 = sld [smem:[#allocation0]]
  $region42: #{tpu_custom_call.1} parent=0
    _
  %s8 = ssub.s32 1, %s6
  %s9 = scalar_select 0, %s8, %s6
  $region1: #{tpu_custom_call.1} parent=0
    #allocation2 [shape = 'u8[4096]{0}', space=vmem, size = 0x1000, scoped, tag = 'input window, operand 0, single buffered']
    #allocation3 [shape = 's32[1]{0}', space=sflag, size = 0x4, scoped, tag = 'scoped memory for tpu_custom_call.1']
    #allocation4 [shape = 's32[1]{0}', space=sflag, size = 0x4, scoped, tag = 'scoped memory for tpu_custom_call.1']
    #allocation5 [shape = 'u8[16384]{0}', space=vmem, size = 0x4000, scoped, tag = 'input window, operand 1, single buffered']
    #allocation6 [shape = 's32[1]{0}', space=sflag, size = 0x4, scoped, tag = 'scoped memory for tpu_custom_call.1']
    #allocation7 [shape = 'u8[65536]{0}', space=vmem, size = 0x10000, scoped, tag = 'input window, operand 3, single buffered']
    #allocation8 [shape = 'u8[4096]{0}', space=vmem, size = 0x1000, scoped, tag = 'output window, operand 0, single buffered']
    %10 = vsyncpa [#allocation3], 0
    %11 = vsyncpa [#allocation6], 0
    %12 = vsyncpa [#allocation4], 0
    // Predicated region
    $region2: #{tpu_custom_call.1} parent=1 // pred_check
      _
    $region3: #{tpu_custom_call.1} parent=1 // pred_check_branch
      %14 = sbr.rel (0) target = $region5
    $region4: #{tpu_custom_call.1} parent=1 // pred_region
      %16 = vsyncadd [#allocation3], 0
      %s18 = sshll.u32 %s0, 4
      %s19 = int_to_ptr.hbm [resolvable:$true] %s18
      %s20 = sshll.u32 [#allocation2], 4
      %s21 = int_to_ptr.vmem [resolvable:$true] %s20
      %23 = dma.hbm_to_vmem [thread:$0]  %s19, 128, %s21, [#allocation3]
    $region5: #{tpu_custom_call.1} parent=1 // pred_fallthru
      _
    // Predicated region
    $region6: #{tpu_custom_call.1} parent=1 // pred_check
      _
    $region7: #{tpu_custom_call.1} parent=1 // pred_check_branch
      %25 = sbr.rel (0) target = $region9
    $region8: #{tpu_custom_call.1} parent=1 // pred_region
      %27 = vsyncadd [#allocation6], 0
      %s28 = sshll.u32 %s1, 4
      %s29 = int_to_ptr.hbm [resolvable:$true] %s28
      %s30 = sshll.u32 [#allocation5], 4
      %s31 = int_to_ptr.vmem [resolvable:$true] %s30
      %36 = dma.hbm_to_vmem [thread:$0]  %s29, 512, %s31, [#allocation6], 128, 128, 8
    $region9: #{tpu_custom_call.1} parent=1 // pred_fallthru
      _
    // Predicated region
    $region10: #{tpu_custom_call.1} parent=1 // pred_check
      _
    $region11: #{tpu_custom_call.1} parent=1 // pred_check_branch
      %38 = sbr.rel (0) target = $region13
    $region12: #{tpu_custom_call.1} parent=1 // pred_region
      _
    $region13: #{tpu_custom_call.1} parent=1 // pred_fallthru
      _
    // Predicated region
    $region14: #{tpu_custom_call.1} parent=1 // pred_check
      _
    $region15: #{tpu_custom_call.1} parent=1 // pred_check_branch
      %40 = sbr.rel (0) target = $region17
    $region16: #{tpu_custom_call.1} parent=1 // pred_region
      %42 = vsyncadd [#allocation6], 0
      %s43 = sshll.u32 %s3, 4
      %s44 = int_to_ptr.hbm [resolvable:$true] %s43
      %s45 = sshll.u32 [#allocation7], 4
      %s46 = int_to_ptr.vmem [resolvable:$true] %s45
      %51 = dma.hbm_to_vmem [thread:$0]  %s44, 2048, %s46, [#allocation6], 128, 128, 8
    $region17: #{tpu_custom_call.1} parent=1 // pred_fallthru
      _
    // Predicated region
    $region18: #{tpu_custom_call.1} parent=1 // pred_check
      _
    $region19: #{tpu_custom_call.1} parent=1 // pred_check_branch
      %53 = sbr.rel (0) target = $region21
    $region20: #{tpu_custom_call.1} parent=1 // pred_region
      _
    $region21: #{tpu_custom_call.1} parent=1 // pred_fallthru
      _
    // Predicated region
    $region22: #{tpu_custom_call.1} parent=1 // pred_check
      _
    $region23: #{tpu_custom_call.1} parent=1 // pred_check_branch
      %55 = sbr.rel (0) target = $region25
    $region24: #{tpu_custom_call.1} parent=1 // pred_region
      %57 = dma.done [#allocation3], 128
    $region25: #{tpu_custom_call.1} parent=1 // pred_fallthru
      _
    // Predicated region
    $region26: #{tpu_custom_call.1} parent=1 // pred_check
      _
    $region27: #{tpu_custom_call.1} parent=1 // pred_check_branch
      %59 = sbr.rel (0) target = $region29
    $region28: #{tpu_custom_call.1} parent=1 // pred_region
      %61 = dma.done [#allocation6], 512
    $region29: #{tpu_custom_call.1} parent=1 // pred_fallthru
      _
    // Predicated region
    $region30: #{tpu_custom_call.1} parent=1 // pred_check
      _
    $region31: #{tpu_custom_call.1} parent=1 // pred_check_branch
      %63 = sbr.rel (0) target = $region33
    $region32: #{tpu_custom_call.1} parent=1 // pred_region
      %65 = dma.done [#allocation6], 2048
    $region33: #{tpu_custom_call.1} parent=1 // pred_fallthru
      _
    %v66 = vld [vmem:[#allocation2] sm:$0xff]
    %v67 = vld [vmem:[#allocation5] sm:$0xff]
    %v68 = vld [vmem:[#allocation5 + $0x8] sm:$0xff]
    %v69 = vld [vmem:[#allocation5 + $0x10] sm:$0xff]
    %v70 = vld [vmem:[#allocation5 + $0x18] sm:$0xff]
    %v71 = vld [vmem:[%s2] sm:$0x1]
    %v73 = vperm.slane %v71, 0
    %vm75 = vcmask 261120
    %v77 = vsel %vm75, %v66, 0
    %79 = vmatpush.msra.mxu0 0.0
    %80 = vmatpush.msra.mxu0 0.0
    %81 = vmatpush.msra.mxu0 0.0
    %82 = vmatpush.msra.mxu0 0.0
    %83 = vmatpush.msra.mxu0 0.0
    %84 = vmatpush.msra.mxu0 0.0
    %85 = vmatpush.msra.mxu0 0.0
    %86 = vmatpush.msra.mxu0 0.0
    %87 = vmatpush.msra.mxu0 0.0
    %88 = vmatpush.msra.mxu0 0.0
    %89 = vmatpush.msra.mxu0 0.0
    %90 = vmatpush.msra.mxu0 0.0
    %91 = vmatpush.msra.mxu0 %v70
    %92 = vmatpush.msra.mxu0 %v69
    %93 = vmatpush.msra.mxu0 %v68
    %94 = vmatpush.msra.mxu0 %v67
    %95 = vmatmul.f32.gmra.mxu0 %v77
    %v96 = vpop.f32.mrf.mxu0
    %v97 = vadd.f32 %v73, %v96
    %98 = vdwg.mxu0
    %v99 = vmax.f32 %v97, 0.0
    %v100 = vld [vmem:[#allocation7] sm:$0xff]
    %v101 = vld [vmem:[#allocation7 + $0x8] sm:$0xff]
    %v102 = vld [vmem:[#allocation7 + $0x10] sm:$0xff]
    %v103 = vld [vmem:[#allocation7 + $0x18] sm:$0xff]
    %v104 = vld [vmem:[#allocation7 + $0x20] sm:$0xff]
    %v105 = vld [vmem:[#allocation7 + $0x28] sm:$0xff]
    %v106 = vld [vmem:[#allocation7 + $0x30] sm:$0xff]
    %v107 = vld [vmem:[#allocation7 + $0x38] sm:$0xff]
    %v108 = vld [vmem:[#allocation7 + $0x40] sm:$0xff]
    %v109 = vld [vmem:[#allocation7 + $0x48] sm:$0xff]
    %v110 = vld [vmem:[#allocation7 + $0x50] sm:$0xff]
    %v111 = vld [vmem:[#allocation7 + $0x58] sm:$0xff]
    %v112 = vld [vmem:[#allocation7 + $0x60] sm:$0xff]
    %v113 = vld [vmem:[#allocation7 + $0x68] sm:$0xff]
    %v114 = vld [vmem:[#allocation7 + $0x70] sm:$0xff]
    %v115 = vld [vmem:[#allocation7 + $0x78] sm:$0xff]
    %v116 = vld [vmem:[%s4] sm:$0x1]
    %v118 = vperm.slane %v116, 0
    %120 = vmatpush.msra.mxu0 %v115
    %121 = vmatpush.msra.mxu0 %v114
    %122 = vmatpush.msra.mxu0 %v113
    %123 = vmatpush.msra.mxu0 %v112
    %124 = vmatpush.msra.mxu0 %v111
    %125 = vmatpush.msra.mxu0 %v110
    %126 = vmatpush.msra.mxu0 %v109
    %127 = vmatpush.msra.mxu0 %v108
    %128 = vmatpush.msra.mxu0 %v107
    %129 = vmatpush.msra.mxu0 %v106
    %130 = vmatpush.msra.mxu0 %v105
    %131 = vmatpush.msra.mxu0 %v104
    %132 = vmatpush.msra.mxu0 %v103
    %133 = vmatpush.msra.mxu0 %v102
    %134 = vmatpush.msra.mxu0 %v101
    %135 = vmatpush.msra.mxu0 %v100
    %136 = vmatmul.f32.gmra.mxu0 %v99
    %v137 = vpop.f32.mrf.mxu0
    %v138 = vadd.f32 %v118, %v137
    %139 = vdwg.mxu0
    %140 = vst [vmem:[#allocation8] sm:$0xff] %v138
    // Predicated region
    $region34: #{tpu_custom_call.1} parent=1 // pred_check
      _
    $region35: #{tpu_custom_call.1} parent=1 // pred_check_branch
      %142 = sbr.rel (0) target = $region37
    $region36: #{tpu_custom_call.1} parent=1 // pred_region
      %144 = vsyncadd [#allocation4], 0
      %s146 = sshll.u32 [#allocation8], 4
      %s147 = int_to_ptr.vmem [resolvable:$true] %s146
      %s148 = sshll.u32 %s5, 4
      %s149 = int_to_ptr.hbm [resolvable:$true] %s148
      %151 = dma.vmem_to_hbm [thread:$0]  %s147, 128, %s149, [#allocation4]
    $region37: #{tpu_custom_call.1} parent=1 // pred_fallthru
      _
    // Predicated region
    $region38: #{tpu_custom_call.1} parent=1 // pred_check
      _
    $region39: #{tpu_custom_call.1} parent=1 // pred_check_branch
      %153 = sbr.rel (0) target = $region41
    $region40: #{tpu_custom_call.1} parent=1 // pred_region
      %155 = dma.done [#allocation4], 128
    $region41: #{tpu_custom_call.1} parent=1 // pred_fallthru
      _
    %156 = vsyncpa [#allocation3], 1
    %157 = vsyncpa [#allocation6], 1
    %158 = vsyncpa [#allocation4], 1

</llo_original>
